<compile_context>
chip_gen: v7x
topology: tpu7x:2x2x1
jax: 0.10.0
libtpu: 0.0.40
codegen_flags: <defaults>
</compile_context>

<pallas_src>
import math

import jax
import jax.numpy as jnp
from jax.experimental import pallas as pl
from jax.experimental.pallas import tpu as pltpu


def _einlinear_kernel(x_ref, w_ref, o_ref):
    # x_ref: (TB, E*I)   w_ref: (E, I, O)   o_ref: (TB, E*O)
    n_models, in_features, _ = w_ref.shape
    outs = []
    for e in range(n_models):  # static unroll; E is small/moderate here
        xe = x_ref[:, e * in_features:(e + 1) * in_features]    # (TB, I) lane slice
        we = w_ref[e]                                            # (I, O) slab load
        outs.append(jnp.dot(xe, we, preferred_element_type=jnp.float32))
    # One concatenated, lane-dense store per tile instead of E masked stores.
    o_ref[...] = jnp.concatenate(outs, axis=-1).astype(o_ref.dtype)


def _vmem_capacity_bytes():
    try:
        return int(pltpu.get_tpu_info().vmem_capacity_bytes)
    except Exception:
        return 64 * 1024 * 1024  # conservative: v7x per-TensorCore VMEM


def _round_up(x, m):
    return ((x + m - 1) // m) * m


def _pick_batch_tile(B, per_row_bytes, tile_budget_bytes):
    """Largest MXU-friendly batch tile that fits the VMEM budget and, when the batch
    allows it, leaves >= 2 grid steps (DMA overlap + both v7x TensorCores busy)."""
    for tb in (1024, 512, 256, 128, 64, 32, 16, 8):
        if tb * per_row_bytes <= tile_budget_bytes and B > tb:
            return tb
    # Whole (8-row padded) batch fits in one small tile -> single grid step.
    tb = max(8, _round_up(B, 8))
    while tb > 8 and tb * per_row_bytes > tile_budget_bytes:
        tb -= 8
    return tb


def ein_linear(x, weight_io, *, compute_dtype=None):
    """EinLinear forward.

    x:         [B, E, I]
    weight_io: [E, I, O]  (torch weight [E, O, I] transposed once, outside this call)
    returns:   [B, E, O] == einsum('eoi,bei->beo', weight_torch, x)
    compute_dtype: optional MXU-operand dtype (e.g. jnp.bfloat16); accumulation stays
                   f32 and the output keeps x's original dtype.
    """
    B, E, I = x.shape
    E_w, I_w, O = weight_io.shape
    assert (E, I) == (E_w, I_w)

    out_dtype = x.dtype
    if compute_dtype is not None:
        x = x.astype(compute_dtype)
        weight_io = weight_io.astype(compute_dtype)

    comp_bytes = jnp.dtype(x.dtype).itemsize
    out_bytes = jnp.dtype(out_dtype).itemsize

    # ---- generation-aware VMEM budget and batch tile ----
    cap = _vmem_capacity_bytes()
    budget = int(cap * 0.6)                                    # headroom for scratch
    w_bytes = E * I * O * comp_bytes
    per_row = 2 * E * (I * comp_bytes + O * out_bytes)         # dbuf'd x+out per batch row
    tile_budget = max(budget - 2 * w_bytes, 8 * per_row)
    TB = _pick_batch_tile(B, per_row, tile_budget)
    nb = -(-B // TB)
    B_pad = nb * TB

    vmem_limit = int(min(int(cap * 0.9),
                         max(32 * 1024 * 1024,
                             2 * w_bytes + TB * per_row + (4 << 20))))

    # ---- zero-copy 2D views: collapse (E, I)/(E, O) into the lane dimension ----
    if B_pad != B:
        x = jnp.pad(x, ((0, B_pad - B), (0, 0), (0, 0)))
    x2d = x.reshape(B_pad, E * I)

    cost = pl.CostEstimate(
        flops=2 * B_pad * E * I * O,
        transcendentals=0,
        bytes_accessed=B_pad * E * I * comp_bytes + w_bytes + B_pad * E * O * out_bytes,
    )

    def _call(single_buffer_weight):
        if single_buffer_weight:
            # Constant block index -> no benefit from double-buffering the weight.
            w_spec = pl.BlockSpec((E, I, O), lambda b: (0, 0, 0),
                                  pipeline_mode=pl.Buffered(1))
        else:
            w_spec = pl.BlockSpec((E, I, O), lambda b: (0, 0, 0))
        return pl.pallas_call(
            _einlinear_kernel,
            out_shape=jax.ShapeDtypeStruct((B_pad, E * O), out_dtype),
            grid_spec=pltpu.PrefetchScalarGridSpec(
                num_scalar_prefetch=0,
                grid=(nb,),
                in_specs=[
                    pl.BlockSpec((TB, E * I), lambda b: (b, 0)),
                    w_spec,
                ],
                out_specs=pl.BlockSpec((TB, E * O), lambda b: (b, 0)),
            ),
            compiler_params=pltpu.CompilerParams(
                dimension_semantics=("parallel",),
                vmem_limit_bytes=vmem_limit,
            ),
            cost_estimate=cost,
        )(x2d, weight_io)

    try:
        out2d = _call(True)
    except Exception:
        # TODO(synk): drop fallback once pl.Buffered(1) single-buffering of a
        # constant-index block is supported on every installed jax version.
        out2d = _call(False)

    return out2d.reshape(B_pad, E, O)[:B]


def ein_linear_forward(x, weight_torch, *, compute_dtype=None):
    """Drop-in equivalent of EinLinear.forward (bias unsupported, as in the module)."""
    weight_io = jnp.transpose(weight_torch, (0, 2, 1))  # one-time [E,O,I] -> [E,I,O]
    return ein_linear(x, weight_io, compute_dtype=compute_dtype)


if __name__ == "__main__":
    # Small shapes consistent with the module's forward: input [B, n_models, in_features].
    B, E, I, O = 8, 4, 32, 16

    key = jax.random.PRNGKey(0)
    k_w, k_x = jax.random.split(key)

    # Matches kaiming_uniform_(a=sqrt(5)) per model: bound = 1/sqrt(fan_in).
    bound = 1.0 / math.sqrt(I)
    weight_oi = jax.random.uniform(
        k_w, (E, O, I), minval=-bound, maxval=bound, dtype=jnp.float32
    )                                                    # torch layout [E, O, I]
    weight_io = jnp.transpose(weight_oi, (0, 2, 1))      # one-time relayout -> [E, I, O]
    x = jax.random.normal(k_x, (B, E, I), dtype=jnp.float32)

    ref = jnp.einsum("eoi,bei->beo", weight_oi, x)

    # f32 operand path (tight tolerance).
    out = jax.block_until_ready(ein_linear(x, weight_io))
    assert out.shape == (B, E, O)
    assert jnp.allclose(out, ref, atol=1e-5, rtol=1e-5)

    # bf16-operand / f32-accumulate fast path (halves HBM traffic; looser tolerance).
    out_bf16 = jax.block_until_ready(ein_linear(x, weight_io, compute_dtype=jnp.bfloat16))
    assert out_bf16.shape == (B, E, O)
    assert jnp.allclose(out_bf16, ref, atol=3e-2, rtol=3e-2)

    print("KERNEL_OK")
</pallas_src>

<mosaic_0001>
module attributes {stable_mosaic.version = 11 : i64} {
  func.func @_einlinear_kernel(%arg0: i32, %arg1: memref<8x128xf32, #tpu.memory_space<vmem>>, %arg2: memref<4x32x16xf32, #tpu.memory_space<vmem>>, %arg3: memref<8x64xf32, #tpu.memory_space<vmem>>) attributes {dimension_semantics = [#tpu.dimension_semantics<parallel>], iteration_bounds = array<i64: 1>, scalar_prefetch = 0 : i64, scratch_operands = 0 : i64, tpu.core_type = #tpu.core_type<tc>, window_params = [{transform_indices = @transform_0, window_bounds = array<i64: 8, 128>}, {pipeline_mode = #tpu.pipeline_mode<synchronous>, transform_indices = @transform_1, window_bounds = array<i64: 4, 32, 16>}, {transform_indices = @transform_2, window_bounds = array<i64: 8, 64>}]} {
    %c0 = arith.constant 0 : index
    %c0_0 = arith.constant 0 : index
    %0 = vector.load %arg1[%c0, %c0_0] : memref<8x128xf32, #tpu.memory_space<vmem>>, vector<8x32xf32>
    %c0_1 = arith.constant 0 : index
    %c0_2 = arith.constant 0 : index
    %c0_3 = arith.constant 0 : index
    %1 = vector.load %arg2[%c0_1, %c0_2, %c0_3] : memref<4x32x16xf32, #tpu.memory_space<vmem>>, vector<1x32x16xf32>
    %2 = vector.shape_cast %1 : vector<1x32x16xf32> to vector<32x16xf32>
    %cst = arith.constant dense<0.000000e+00> : vector<8x16xf32>
    %3 = tpu.matmul %0, %2, %cst {dimension_numbers = #tpu.dot_dimension_numbers<[1], [0], [0], [1], [0, 0, 1, 1], [], []>} : vector<8x32xf32>, vector<32x16xf32>, vector<8x16xf32> -> vector<8x16xf32>
    %c0_4 = arith.constant 0 : index
    %c32 = arith.constant 32 : index
    %4 = vector.load %arg1[%c0_4, %c32] : memref<8x128xf32, #tpu.memory_space<vmem>>, vector<8x32xf32>
    %c1 = arith.constant 1 : index
    %c0_5 = arith.constant 0 : index
    %c0_6 = arith.constant 0 : index
    %5 = vector.load %arg2[%c1, %c0_5, %c0_6] : memref<4x32x16xf32, #tpu.memory_space<vmem>>, vector<1x32x16xf32>
    %6 = vector.shape_cast %5 : vector<1x32x16xf32> to vector<32x16xf32>
    %cst_7 = arith.constant dense<0.000000e+00> : vector<8x16xf32>
    %7 = tpu.matmul %4, %6, %cst_7 {dimension_numbers = #tpu.dot_dimension_numbers<[1], [0], [0], [1], [0, 0, 1, 1], [], []>} : vector<8x32xf32>, vector<32x16xf32>, vector<8x16xf32> -> vector<8x16xf32>
    %c0_8 = arith.constant 0 : index
    %c64 = arith.constant 64 : index
    %8 = vector.load %arg1[%c0_8, %c64] : memref<8x128xf32, #tpu.memory_space<vmem>>, vector<8x32xf32>
    %c2 = arith.constant 2 : index
    %c0_9 = arith.constant 0 : index
    %c0_10 = arith.constant 0 : index
    %9 = vector.load %arg2[%c2, %c0_9, %c0_10] : memref<4x32x16xf32, #tpu.memory_space<vmem>>, vector<1x32x16xf32>
    %10 = vector.shape_cast %9 : vector<1x32x16xf32> to vector<32x16xf32>
    %cst_11 = arith.constant dense<0.000000e+00> : vector<8x16xf32>
    %11 = tpu.matmul %8, %10, %cst_11 {dimension_numbers = #tpu.dot_dimension_numbers<[1], [0], [0], [1], [0, 0, 1, 1], [], []>} : vector<8x32xf32>, vector<32x16xf32>, vector<8x16xf32> -> vector<8x16xf32>
    %c0_12 = arith.constant 0 : index
    %c96 = arith.constant 96 : index
    %12 = vector.load %arg1[%c0_12, %c96] : memref<8x128xf32, #tpu.memory_space<vmem>>, vector<8x32xf32>
    %c3 = arith.constant 3 : index
    %c0_13 = arith.constant 0 : index
    %c0_14 = arith.constant 0 : index
    %13 = vector.load %arg2[%c3, %c0_13, %c0_14] : memref<4x32x16xf32, #tpu.memory_space<vmem>>, vector<1x32x16xf32>
    %14 = vector.shape_cast %13 : vector<1x32x16xf32> to vector<32x16xf32>
    %cst_15 = arith.constant dense<0.000000e+00> : vector<8x16xf32>
    %15 = tpu.matmul %12, %14, %cst_15 {dimension_numbers = #tpu.dot_dimension_numbers<[1], [0], [0], [1], [0, 0, 1, 1], [], []>} : vector<8x32xf32>, vector<32x16xf32>, vector<8x16xf32> -> vector<8x16xf32>
    %16 = tpu.concatenate %3, %7, %11, %15 in 1 : vector<8x16xf32>, vector<8x16xf32>, vector<8x16xf32>, vector<8x16xf32> -> vector<8x64xf32>
    %c0_16 = arith.constant 0 : index
    %c0_17 = arith.constant 0 : index
    %17 = vector.load %arg3[%c0_16, %c0_17] : memref<8x64xf32, #tpu.memory_space<vmem>>, vector<8x64xf32>
    tpu.vector_store %arg3[%c0_16, %c0_17], %16 {strides = array<i32>} : memref<8x64xf32, #tpu.memory_space<vmem>>, vector<8x64xf32>,
    return
  }
  func.func @transform_0(%arg0: i32) -> (i32, i32) {
    %c0_i32 = arith.constant 0 : i32
    %c0_i32_0 = arith.constant 0 : i32
    return %arg0, %c0_i32 : i32, i32
  }
  func.func @transform_1(%arg0: i32) -> (i32, i32, i32) {
    %c0_i32 = arith.constant 0 : i32
    %c0_i32_0 = arith.constant 0 : i32
    %c0_i32_1 = arith.constant 0 : i32
    %c0_i32_2 = arith.constant 0 : i32
    return %c0_i32, %c0_i32_0, %c0_i32_1 : i32, i32, i32
  }
  func.func @transform_2(%arg0: i32) -> (i32, i32) {
    %c0_i32 = arith.constant 0 : i32
    %c0_i32_0 = arith.constant 0 : i32
    return %arg0, %c0_i32 : i32, i32
  }
}

module attributes {stable_mosaic.version = 11 : i64} {
  func.func @_einlinear_kernel(%arg0: i32, %arg1: memref<8x128xf32, #tpu.memory_space<vmem>>, %arg2: memref<4x32x16xf32, #tpu.memory_space<vmem>>, %arg3: memref<8x64xf32, #tpu.memory_space<vmem>>) attributes {dimension_semantics = [#tpu.dimension_semantics<parallel>], iteration_bounds = array<i64: 1>, scalar_prefetch = 0 : i64, scratch_operands = 0 : i64, tpu.core_type = #tpu.core_type<tc>, window_params = [{transform_indices = @transform_0, window_bounds = array<i64: 8, 128>}, {pipeline_mode = #tpu.pipeline_mode<synchronous>, transform_indices = @transform_1, window_bounds = array<i64: 4, 32, 16>}, {transform_indices = @transform_2, window_bounds = array<i64: 8, 64>}]} {
    %c0 = arith.constant 0 : index
    %c0_0 = arith.constant 0 : index
    %0 = vector.load %arg1[%c0, %c0_0] : memref<8x128xf32, #tpu.memory_space<vmem>>, vector<8x32xf32>
    %c0_1 = arith.constant 0 : index
    %c0_2 = arith.constant 0 : index
    %c0_3 = arith.constant 0 : index
    %1 = vector.load %arg2[%c0_1, %c0_2, %c0_3] : memref<4x32x16xf32, #tpu.memory_space<vmem>>, vector<1x32x16xf32>
    %2 = vector.shape_cast %1 : vector<1x32x16xf32> to vector<32x16xf32>
    %cst = arith.constant dense<0.000000e+00> : vector<8x16xf32>
    %3 = tpu.matmul %0, %2, %cst {dimension_numbers = #tpu.dot_dimension_numbers<[1], [0], [0], [1], [0, 0, 1, 1], [], []>} : vector<8x32xf32>, vector<32x16xf32>, vector<8x16xf32> -> vector<8x16xf32>
    %c0_4 = arith.constant 0 : index
    %c32 = arith.constant 32 : index
    %4 = vector.load %arg1[%c0_4, %c32] : memref<8x128xf32, #tpu.memory_space<vmem>>, vector<8x32xf32>
    %c1 = arith.constant 1 : index
    %c0_5 = arith.constant 0 : index
    %c0_6 = arith.constant 0 : index
    %5 = vector.load %arg2[%c1, %c0_5, %c0_6] : memref<4x32x16xf32, #tpu.memory_space<vmem>>, vector<1x32x16xf32>
    %6 = vector.shape_cast %5 : vector<1x32x16xf32> to vector<32x16xf32>
    %cst_7 = arith.constant dense<0.000000e+00> : vector<8x16xf32>
    %7 = tpu.matmul %4, %6, %cst_7 {dimension_numbers = #tpu.dot_dimension_numbers<[1], [0], [0], [1], [0, 0, 1, 1], [], []>} : vector<8x32xf32>, vector<32x16xf32>, vector<8x16xf32> -> vector<8x16xf32>
    %c0_8 = arith.constant 0 : index
    %c64 = arith.constant 64 : index
    %8 = vector.load %arg1[%c0_8, %c64] : memref<8x128xf32, #tpu.memory_space<vmem>>, vector<8x32xf32>
    %c2 = arith.constant 2 : index
    %c0_9 = arith.constant 0 : index
    %c0_10 = arith.constant 0 : index
    %9 = vector.load %arg2[%c2, %c0_9, %c0_10] : memref<4x32x16xf32, #tpu.memory_space<vmem>>, vector<1x32x16xf32>
    %10 = vector.shape_cast %9 : vector<1x32x16xf32> to vector<32x16xf32>
    %cst_11 = arith.constant dense<0.000000e+00> : vector<8x16xf32>
    %11 = tpu.matmul %8, %10, %cst_11 {dimension_numbers = #tpu.dot_dimension_numbers<[1], [0], [0], [1], [0, 0, 1, 1], [], []>} : vector<8x32xf32>, vector<32x16xf32>, vector<8x16xf32> -> vector<8x16xf32>
    %c0_12 = arith.constant 0 : index
    %c96 = arith.constant 96 : index
    %12 = vector.load %arg1[%c0_12, %c96] : memref<8x128xf32, #tpu.memory_space<vmem>>, vector<8x32xf32>
    %c3 = arith.constant 3 : index
    %c0_13 = arith.constant 0 : index
    %c0_14 = arith.constant 0 : index
    %13 = vector.load %arg2[%c3, %c0_13, %c0_14] : memref<4x32x16xf32, #tpu.memory_space<vmem>>, vector<1x32x16xf32>
    %14 = vector.shape_cast %13 : vector<1x32x16xf32> to vector<32x16xf32>
    %cst_15 = arith.constant dense<0.000000e+00> : vector<8x16xf32>
    %15 = tpu.matmul %12, %14, %cst_15 {dimension_numbers = #tpu.dot_dimension_numbers<[1], [0], [0], [1], [0, 0, 1, 1], [], []>} : vector<8x32xf32>, vector<32x16xf32>, vector<8x16xf32> -> vector<8x16xf32>
    %16 = tpu.concatenate %3, %7, %11, %15 in 1 : vector<8x16xf32>, vector<8x16xf32>, vector<8x16xf32>, vector<8x16xf32> -> vector<8x64xf32>
    %c0_16 = arith.constant 0 : index
    %c0_17 = arith.constant 0 : index
    %17 = vector.load %arg3[%c0_16, %c0_17] : memref<8x64xf32, #tpu.memory_space<vmem>>, vector<8x64xf32>
    tpu.vector_store %arg3[%c0_16, %c0_17], %16 {strides = array<i32>} : memref<8x64xf32, #tpu.memory_space<vmem>>, vector<8x64xf32>,
    return
  }
  func.func @transform_0(%arg0: i32) -> (i32, i32) {
    %c0_i32 = arith.constant 0 : i32
    %c0_i32_0 = arith.constant 0 : i32
    return %arg0, %c0_i32 : i32, i32
  }
  func.func @transform_1(%arg0: i32) -> (i32, i32, i32) {
    %c0_i32 = arith.constant 0 : i32
    %c0_i32_0 = arith.constant 0 : i32
    %c0_i32_1 = arith.constant 0 : i32
    %c0_i32_2 = arith.constant 0 : i32
    return %c0_i32, %c0_i32_0, %c0_i32_1 : i32, i32, i32
  }
  func.func @transform_2(%arg0: i32) -> (i32, i32) {
    %c0_i32 = arith.constant 0 : i32
    %c0_i32_0 = arith.constant 0 : i32
    return %arg0, %c0_i32 : i32, i32
  }
}

</mosaic_0001>

<llo_original>
// kernel: tpu_custom_call.1
$region0: #{tpu_custom_call.1}
  #allocation0 [shape = 'u32[]', space=smem, size = 0x4, offset = 0x4, fixed_abs, tag = 'smem constant byte address 0x4 - core index']
  #allocation1 [shape = 'u32[144,128]{1,0:T(1,128)}', space=vmem, size = 0x12000, scoped, tag = 'internal scratch']
  %s0 = inlined_call_operand.vmem [shape: f32[8,128], index: 0, kind: input, shape index: {}]
  %s1 = inlined_call_operand.vmem [shape: f32[4,32,16], index: 1, kind: input, shape index: {}]
  %s2 = inlined_call_operand.hbm [shape: f32[8,64], index: 2, kind: output, shape index: {}]
  %s3 = sld [smem:[#allocation0]]
  $region18: #{tpu_custom_call.1} parent=0
    _
  %s5 = ssub.s32 1, %s3
  %s6 = scalar_select 0, %s5, %s3
  $region1: #{tpu_custom_call.1} parent=0
    #allocation2 [shape = 'u8[4096]{0}', space=vmem, size = 0x1000, scoped, tag = 'output window, operand 0, single buffered']
    #allocation3 [shape = 's32[1]{0}', space=sflag, size = 0x4, scoped, tag = 'scoped memory for tpu_custom_call.1']
    %7 = vsyncpa [#allocation3], 0
    // Predicated region
    $region2: #{tpu_custom_call.1} parent=1 // pred_check
      _
    $region3: #{tpu_custom_call.1} parent=1 // pred_check_branch
      %9 = sbr.rel (0) target = $region5
    $region4: #{tpu_custom_call.1} parent=1 // pred_region
      _
    $region5: #{tpu_custom_call.1} parent=1 // pred_fallthru
      _
    // Predicated region
    $region6: #{tpu_custom_call.1} parent=1 // pred_check
      _
    $region7: #{tpu_custom_call.1} parent=1 // pred_check_branch
      %11 = sbr.rel (0) target = $region9
    $region8: #{tpu_custom_call.1} parent=1 // pred_region
      _
    $region9: #{tpu_custom_call.1} parent=1 // pred_fallthru
      _
    %v12 = vld [vmem:[%s0] sm:$0xff]
    %v13 = vld [vmem:[%s1] sm:$0xff]
    %v14 = vld [vmem:[%s1 + $0x8] sm:$0xff]
    %v15 = vld [vmem:[%s1 + $0x10] sm:$0xff]
    %v16 = vld [vmem:[%s1 + $0x18] sm:$0xff]
    %vm17 = vcmask 261120
    %v19 = vsel %vm17, %v12, 0
    %21 = vmatprep.subr.mxu0 0.0
    %22 = vmatpush1.msra.mxu0 %v13
    %23 = vmatprep.subr.mxu0 0.0
    %24 = vmatpush1.msra.mxu0 %v14
    %25 = vmatprep.subr.mxu0 0.0
    %26 = vmatpush1.msra.mxu0 %v15
    %27 = vmatprep.subr.mxu0 0.0
    %28 = vmatpush1.msra.mxu0 %v16
    %29 = vmatprep.subr.mxu0 0.0
    %30 = vmatpush1.msra.mxu0 0.0
    %31 = vmatprep.subr.mxu0 0.0
    %32 = vmatpush1.msra.mxu0 0.0
    %33 = vmatprep.subr.mxu0 0.0
    %34 = vmatpush1.msra.mxu0 0.0
    %35 = vmatprep.subr.mxu0 0.0
    %36 = vmatpush1.msra.mxu0 0.0
    %37 = vmatprep.subr.mxu0 0.0
    %38 = vmatpush1.msra.mxu0 0.0
    %39 = vmatprep.subr.mxu0 0.0
    %40 = vmatpush1.msra.mxu0 0.0
    %41 = vmatprep.subr.mxu0 0.0
    %42 = vmatpush1.msra.mxu0 0.0
    %43 = vmatprep.subr.mxu0 0.0
    %44 = vmatpush1.msra.mxu0 0.0
    %45 = vmatprep.subr.mxu0 0.0
    %46 = vmatpush1.msra.mxu0 0.0
    %47 = vmatprep.subr.mxu0 0.0
    %48 = vmatpush1.msra.mxu0 0.0
    %49 = vmatprep.subr.mxu0 0.0
    %50 = vmatpush1.msra.mxu0 0.0
    %51 = vmatprep.subr.mxu0 0.0
    %52 = vmatpush1.msra.mxu0 0.0
    %53 = vmatprep.subr.mxu0 0.0
    %54 = vmatpush1.msra.mxu0 0.0
    %55 = vmatprep.subr.mxu0 0.0
    %56 = vmatpush1.msra.mxu0 0.0
    %57 = vmatprep.subr.mxu0 0.0
    %58 = vmatpush1.msra.mxu0 0.0
    %59 = vmatprep.subr.mxu0 0.0
    %60 = vmatpush1.msra.mxu0 0.0
    %61 = vmatprep.subr.mxu0 0.0
    %62 = vmatpush1.msra.mxu0 0.0
    %63 = vmatprep.subr.mxu0 0.0
    %64 = vmatpush1.msra.mxu0 0.0
    %65 = vmatprep.subr.mxu0 0.0
    %66 = vmatpush1.msra.mxu0 0.0
    %67 = vmatprep.subr.mxu0 0.0
    %68 = vmatpush1.msra.mxu0 0.0
    %69 = vmatprep.subr.mxu0 0.0
    %70 = vmatpush1.msra.mxu0 0.0
    %71 = vmatprep.subr.mxu0 0.0
    %72 = vmatpush1.msra.mxu0 0.0
    %73 = vmatprep.subr.mxu0 0.0
    %74 = vmatpush1.msra.mxu0 0.0
    %75 = vmatprep.subr.mxu0 0.0
    %76 = vmatpush1.msra.mxu0 0.0
    %77 = vmatprep.subr.mxu0 0.0
    %78 = vmatpush1.msra.mxu0 0.0
    %79 = vmatprep.subr.mxu0 0.0
    %80 = vmatpush1.msra.mxu0 0.0
    %81 = vmatprep.subr.mxu0 0.0
    %82 = vmatpush1.msra.mxu0 0.0
    %83 = vmatprep.subr.mxu0 0.0
    %84 = vmatpush1.msra.mxu0 0.0
    %85 = vmatprep.mubr.f32.mxu0 0.0
    %86 = vmatmul.mubr.f32.gmra.mrb[0].mxu0 %v19
    %v87 = vpop.f32.mrb[0].mxu0
    %v88 = vadd.f32 0.0, %v87
    %v89 = vpop.f32.mrb[0].mxu0
    %90 = vdwg.mxu0
    %s91 = scalar_lea.vmem %s1, 32
    %v92 = vld [vmem:[%s91] sm:$0xff]
    %v93 = vld [vmem:[%s91 + $0x8] sm:$0xff]
    %v94 = vld [vmem:[%s91 + $0x10] sm:$0xff]
    %v95 = vld [vmem:[%s91 + $0x18] sm:$0xff]
    %96 = vrot.lane.b32.xlu0 %v12, 96
    %v97 = vpop.permute.xlu0 %96
    %v98 = vsel %vm17, %v97, 0
    %100 = vmatprep.subr.mxu0 0.0
    %101 = vmatpush1.msra.mxu0 %v92
    %102 = vmatprep.subr.mxu0 0.0
    %103 = vmatpush1.msra.mxu0 %v93
    %104 = vmatprep.subr.mxu0 0.0
    %105 = vmatpush1.msra.mxu0 %v94
    %106 = vmatprep.subr.mxu0 0.0
    %107 = vmatpush1.msra.mxu0 %v95
    %108 = vmatprep.subr.mxu0 0.0
    %109 = vmatpush1.msra.mxu0 0.0
    %110 = vmatprep.subr.mxu0 0.0
    %111 = vmatpush1.msra.mxu0 0.0
    %112 = vmatprep.subr.mxu0 0.0
    %113 = vmatpush1.msra.mxu0 0.0
    %114 = vmatprep.subr.mxu0 0.0
    %115 = vmatpush1.msra.mxu0 0.0
    %116 = vmatprep.subr.mxu0 0.0
    %117 = vmatpush1.msra.mxu0 0.0
    %118 = vmatprep.subr.mxu0 0.0
    %119 = vmatpush1.msra.mxu0 0.0
    %120 = vmatprep.subr.mxu0 0.0
    %121 = vmatpush1.msra.mxu0 0.0
    %122 = vmatprep.subr.mxu0 0.0
    %123 = vmatpush1.msra.mxu0 0.0
    %124 = vmatprep.subr.mxu0 0.0
    %125 = vmatpush1.msra.mxu0 0.0
    %126 = vmatprep.subr.mxu0 0.0
    %127 = vmatpush1.msra.mxu0 0.0
    %128 = vmatprep.subr.mxu0 0.0
    %129 = vmatpush1.msra.mxu0 0.0
    %130 = vmatprep.subr.mxu0 0.0
    %131 = vmatpush1.msra.mxu0 0.0
    %132 = vmatprep.subr.mxu0 0.0
    %133 = vmatpush1.msra.mxu0 0.0
    %134 = vmatprep.subr.mxu0 0.0
    %135 = vmatpush1.msra.mxu0 0.0
    %136 = vmatprep.subr.mxu0 0.0
    %137 = vmatpush1.msra.mxu0 0.0
    %138 = vmatprep.subr.mxu0 0.0
    %139 = vmatpush1.msra.mxu0 0.0
    %140 = vmatprep.subr.mxu0 0.0
    %141 = vmatpush1.msra.mxu0 0.0
    %142 = vmatprep.subr.mxu0 0.0
    %143 = vmatpush1.msra.mxu0 0.0
    %144 = vmatprep.subr.mxu0 0.0
    %145 = vmatpush1.msra.mxu0 0.0
    %146 = vmatprep.subr.mxu0 0.0
    %147 = vmatpush1.msra.mxu0 0.0
    %148 = vmatprep.subr.mxu0 0.0
    %149 = vmatpush1.msra.mxu0 0.0
    %150 = vmatprep.subr.mxu0 0.0
    %151 = vmatpush1.msra.mxu0 0.0
    %152 = vmatprep.subr.mxu0 0.0
    %153 = vmatpush1.msra.mxu0 0.0
    %154 = vmatprep.subr.mxu0 0.0
    %155 = vmatpush1.msra.mxu0 0.0
    %156 = vmatprep.subr.mxu0 0.0
    %157 = vmatpush1.msra.mxu0 0.0
    %158 = vmatprep.subr.mxu0 0.0
    %159 = vmatpush1.msra.mxu0 0.0
    %160 = vmatprep.subr.mxu0 0.0
    %161 = vmatpush1.msra.mxu0 0.0
    %162 = vmatprep.subr.mxu0 0.0
    %163 = vmatpush1.msra.mxu0 0.0
    %164 = vmatprep.mubr.f32.mxu0 0.0
    %165 = vmatmul.mubr.f32.gmra.mrb[0].mxu0 %v98
    %v166 = vpop.f32.mrb[0].mxu0
    %v167 = vadd.f32 0.0, %v166
    %v168 = vpop.f32.mrb[0].mxu0
    %169 = vdwg.mxu0
    %s170 = scalar_lea.vmem %s1, 64
    %v171 = vld [vmem:[%s170] sm:$0xff]
    %v172 = vld [vmem:[%s170 + $0x8] sm:$0xff]
    %v173 = vld [vmem:[%s170 + $0x10] sm:$0xff]
    %v174 = vld [vmem:[%s170 + $0x18] sm:$0xff]
    %175 = vrot.lane.b32.xlu0 %v12, 64
    %v176 = vpop.permute.xlu0 %175
    %v177 = vsel %vm17, %v176, 0
    %179 = vmatprep.subr.mxu0 0.0
    %180 = vmatpush1.msra.mxu0 %v171
    %181 = vmatprep.subr.mxu0 0.0
    %182 = vmatpush1.msra.mxu0 %v172
    %183 = vmatprep.subr.mxu0 0.0
    %184 = vmatpush1.msra.mxu0 %v173
    %185 = vmatprep.subr.mxu0 0.0
    %186 = vmatpush1.msra.mxu0 %v174
    %187 = vmatprep.subr.mxu0 0.0
    %188 = vmatpush1.msra.mxu0 0.0
    %189 = vmatprep.subr.mxu0 0.0
    %190 = vmatpush1.msra.mxu0 0.0
    %191 = vmatprep.subr.mxu0 0.0
    %192 = vmatpush1.msra.mxu0 0.0
    %193 = vmatprep.subr.mxu0 0.0
    %194 = vmatpush1.msra.mxu0 0.0
    %195 = vmatprep.subr.mxu0 0.0
    %196 = vmatpush1.msra.mxu0 0.0
    %197 = vmatprep.subr.mxu0 0.0
    %198 = vmatpush1.msra.mxu0 0.0
    %199 = vmatprep.subr.mxu0 0.0
    %200 = vmatpush1.msra.mxu0 0.0
    %201 = vmatprep.subr.mxu0 0.0
    %202 = vmatpush1.msra.mxu0 0.0
    %203 = vmatprep.subr.mxu0 0.0
    %204 = vmatpush1.msra.mxu0 0.0
    %205 = vmatprep.subr.mxu0 0.0
    %206 = vmatpush1.msra.mxu0 0.0
    %207 = vmatprep.subr.mxu0 0.0
    %208 = vmatpush1.msra.mxu0 0.0
    %209 = vmatprep.subr.mxu0 0.0
    %210 = vmatpush1.msra.mxu0 0.0
    %211 = vmatprep.subr.mxu0 0.0
    %212 = vmatpush1.msra.mxu0 0.0
    %213 = vmatprep.subr.mxu0 0.0
    %214 = vmatpush1.msra.mxu0 0.0
    %215 = vmatprep.subr.mxu0 0.0
    %216 = vmatpush1.msra.mxu0 0.0
    %217 = vmatprep.subr.mxu0 0.0
    %218 = vmatpush1.msra.mxu0 0.0
    %219 = vmatprep.subr.mxu0 0.0
    %220 = vmatpush1.msra.mxu0 0.0
    %221 = vmatprep.subr.mxu0 0.0
    %222 = vmatpush1.msra.mxu0 0.0
    %223 = vmatprep.subr.mxu0 0.0
    %224 = vmatpush1.msra.mxu0 0.0
    %225 = vmatprep.subr.mxu0 0.0
    %226 = vmatpush1.msra.mxu0 0.0
    %227 = vmatprep.subr.mxu0 0.0
    %228 = vmatpush1.msra.mxu0 0.0
    %229 = vmatprep.subr.mxu0 0.0
    %230 = vmatpush1.msra.mxu0 0.0
    %231 = vmatprep.subr.mxu0 0.0
    %232 = vmatpush1.msra.mxu0 0.0
    %233 = vmatprep.subr.mxu0 0.0
    %234 = vmatpush1.msra.mxu0 0.0
    %235 = vmatprep.subr.mxu0 0.0
    %236 = vmatpush1.msra.mxu0 0.0
    %237 = vmatprep.subr.mxu0 0.0
    %238 = vmatpush1.msra.mxu0 0.0
    %239 = vmatprep.subr.mxu0 0.0
    %240 = vmatpush1.msra.mxu0 0.0
    %241 = vmatprep.subr.mxu0 0.0
    %242 = vmatpush1.msra.mxu0 0.0
    %243 = vmatprep.mubr.f32.mxu0 0.0
    %244 = vmatmul.mubr.f32.gmra.mrb[0].mxu0 %v177
    %v245 = vpop.f32.mrb[0].mxu0
    %v246 = vadd.f32 0.0, %v245
    %v247 = vpop.f32.mrb[0].mxu0
    %248 = vdwg.mxu0
    %s249 = scalar_lea.vmem %s1, 96
    %v250 = vld [vmem:[%s249] sm:$0xff]
    %v251 = vld [vmem:[%s249 + $0x8] sm:$0xff]
    %v252 = vld [vmem:[%s249 + $0x10] sm:$0xff]
    %v253 = vld [vmem:[%s249 + $0x18] sm:$0xff]
    %254 = vrot.lane.b32.xlu0 %v12, 32
    %v255 = vpop.permute.xlu0 %254
    %v256 = vsel %vm17, %v255, 0
    %258 = vmatprep.subr.mxu0 0.0
    %259 = vmatpush1.msra.mxu0 %v250
    %260 = vmatprep.subr.mxu0 0.0
    %261 = vmatpush1.msra.mxu0 %v251
    %262 = vmatprep.subr.mxu0 0.0
    %263 = vmatpush1.msra.mxu0 %v252
    %264 = vmatprep.subr.mxu0 0.0
    %265 = vmatpush1.msra.mxu0 %v253
    %266 = vmatprep.subr.mxu0 0.0
    %267 = vmatpush1.msra.mxu0 0.0
    %268 = vmatprep.subr.mxu0 0.0
    %269 = vmatpush1.msra.mxu0 0.0
    %270 = vmatprep.subr.mxu0 0.0
    %271 = vmatpush1.msra.mxu0 0.0
    %272 = vmatprep.subr.mxu0 0.0
    %273 = vmatpush1.msra.mxu0 0.0
    %274 = vmatprep.subr.mxu0 0.0
    %275 = vmatpush1.msra.mxu0 0.0
    %276 = vmatprep.subr.mxu0 0.0
    %277 = vmatpush1.msra.mxu0 0.0
    %278 = vmatprep.subr.mxu0 0.0
    %279 = vmatpush1.msra.mxu0 0.0
    %280 = vmatprep.subr.mxu0 0.0
    %281 = vmatpush1.msra.mxu0 0.0
    %282 = vmatprep.subr.mxu0 0.0
    %283 = vmatpush1.msra.mxu0 0.0
    %284 = vmatprep.subr.mxu0 0.0
    %285 = vmatpush1.msra.mxu0 0.0
    %286 = vmatprep.subr.mxu0 0.0
    %287 = vmatpush1.msra.mxu0 0.0
    %288 = vmatprep.subr.mxu0 0.0
    %289 = vmatpush1.msra.mxu0 0.0
    %290 = vmatprep.subr.mxu0 0.0
    %291 = vmatpush1.msra.mxu0 0.0
    %292 = vmatprep.subr.mxu0 0.0
    %293 = vmatpush1.msra.mxu0 0.0
    %294 = vmatprep.subr.mxu0 0.0
    %295 = vmatpush1.msra.mxu0 0.0
    %296 = vmatprep.subr.mxu0 0.0
    %297 = vmatpush1.msra.mxu0 0.0
    %298 = vmatprep.subr.mxu0 0.0
    %299 = vmatpush1.msra.mxu0 0.0
    %300 = vmatprep.subr.mxu0 0.0
    %301 = vmatpush1.msra.mxu0 0.0
    %302 = vmatprep.subr.mxu0 0.0
    %303 = vmatpush1.msra.mxu0 0.0
    %304 = vmatprep.subr.mxu0 0.0
    %305 = vmatpush1.msra.mxu0 0.0
    %306 = vmatprep.subr.mxu0 0.0
    %307 = vmatpush1.msra.mxu0 0.0
    %308 = vmatprep.subr.mxu0 0.0
    %309 = vmatpush1.msra.mxu0 0.0
    %310 = vmatprep.subr.mxu0 0.0
    %311 = vmatpush1.msra.mxu0 0.0
    %312 = vmatprep.subr.mxu0 0.0
    %313 = vmatpush1.msra.mxu0 0.0
    %314 = vmatprep.subr.mxu0 0.0
    %315 = vmatpush1.msra.mxu0 0.0
    %316 = vmatprep.subr.mxu0 0.0
    %317 = vmatpush1.msra.mxu0 0.0
    %318 = vmatprep.subr.mxu0 0.0
    %319 = vmatpush1.msra.mxu0 0.0
    %320 = vmatprep.subr.mxu0 0.0
    %321 = vmatpush1.msra.mxu0 0.0
    %322 = vmatprep.mubr.f32.mxu0 0.0
    %323 = vmatmul.mubr.f32.gmra.mrb[0].mxu0 %v256
    %v324 = vpop.f32.mrb[0].mxu0
    %v325 = vadd.f32 0.0, %v324
    %v326 = vpop.f32.mrb[0].mxu0
    %327 = vdwg.mxu0
    %329 = vrot.lane.b32.xlu0 %v167, 16
    %v330 = vpop.permute.xlu0 %329
    %333 = vrot.lane.b32.xlu0 %v246, 32
    %v334 = vpop.permute.xlu0 %333
    %337 = vrot.lane.b32.xlu0 %v325, 48
    %v338 = vpop.permute.xlu0 %337
    %vm340 = vcmask 130048
    %v341 = vsel %vm340, %v88, %v330
    %v342 = vsel %vm17, %v341, %v334
    %vm343 = vcmask 392192
    %v344 = vsel %vm343, %v342, %v338
    %vm345 = vcmask 523264
    %346 = vst.msk [vmem:[#allocation2] sm:$0xff] %vm345, %v344
    // Predicated region
    $region10: #{tpu_custom_call.1} parent=1 // pred_check
      _
    $region11: #{tpu_custom_call.1} parent=1 // pred_check_branch
      %348 = sbr.rel (0) target = $region13
    $region12: #{tpu_custom_call.1} parent=1 // pred_region
      %s350 = ssub.s32 128, 128
      %351 = vsyncadd [#allocation3], %s350
      %s353 = sshll.u32 [#allocation2], 4
      %s354 = int_to_ptr.vmem [resolvable:$true] %s353
      %356 = dma.vmem_to_hbm [thread:$0]  %s354, 128, %s2, [#allocation3]
    $region13: #{tpu_custom_call.1} parent=1 // pred_fallthru
      _
    // Predicated region
    $region14: #{tpu_custom_call.1} parent=1 // pred_check
      _
    $region15: #{tpu_custom_call.1} parent=1 // pred_check_branch
      %358 = sbr.rel (0) target = $region17
    $region16: #{tpu_custom_call.1} parent=1 // pred_region
      %359 = dma.done [#allocation3], 128
    $region17: #{tpu_custom_call.1} parent=1 // pred_fallthru
      _
    %360 = vsyncpa [#allocation3], 1

// kernel: tpu_custom_call.1
$region0: #{tpu_custom_call.1}
  #allocation0 [shape = 'u32[]', space=smem, size = 0x4, offset = 0x4, fixed_abs, tag = 'smem constant byte address 0x4 - core index']
  #allocation1 [shape = 'u32[144,128]{1,0:T(1,128)}', space=vmem, size = 0x12000, scoped, tag = 'internal scratch']
  %s0 = inlined_call_operand.vmem [shape: f32[8,128], index: 0, kind: input, shape index: {}]
  %s1 = inlined_call_operand.vmem [shape: f32[4,32,16], index: 1, kind: input, shape index: {}]
  %s2 = inlined_call_operand.hbm [shape: f32[8,64], index: 2, kind: output, shape index: {}]
  %s3 = sld [smem:[#allocation0]]
  $region18: #{tpu_custom_call.1} parent=0
    _
  %s5 = ssub.s32 1, %s3
  %s6 = scalar_select 0, %s5, %s3
  $region1: #{tpu_custom_call.1} parent=0
    #allocation2 [shape = 'u8[4096]{0}', space=vmem, size = 0x1000, scoped, tag = 'output window, operand 0, single buffered']
    #allocation3 [shape = 's32[1]{0}', space=sflag, size = 0x4, scoped, tag = 'scoped memory for tpu_custom_call.1']
    %7 = vsyncpa [#allocation3], 0
    // Predicated region
    $region2: #{tpu_custom_call.1} parent=1 // pred_check
      _
    $region3: #{tpu_custom_call.1} parent=1 // pred_check_branch
      %9 = sbr.rel (0) target = $region5
    $region4: #{tpu_custom_call.1} parent=1 // pred_region
      _
    $region5: #{tpu_custom_call.1} parent=1 // pred_fallthru
      _
    // Predicated region
    $region6: #{tpu_custom_call.1} parent=1 // pred_check
      _
    $region7: #{tpu_custom_call.1} parent=1 // pred_check_branch
      %11 = sbr.rel (0) target = $region9
    $region8: #{tpu_custom_call.1} parent=1 // pred_region
      _
    $region9: #{tpu_custom_call.1} parent=1 // pred_fallthru
      _
    %v12 = vld [vmem:[%s0] sm:$0xff]
    %v13 = vld [vmem:[%s1] sm:$0xff]
    %v14 = vld [vmem:[%s1 + $0x8] sm:$0xff]
    %v15 = vld [vmem:[%s1 + $0x10] sm:$0xff]
    %v16 = vld [vmem:[%s1 + $0x18] sm:$0xff]
    %vm17 = vcmask 261120
    %v19 = vsel %vm17, %v12, 0
    %21 = vmatprep.subr.mxu0 0.0
    %22 = vmatpush1.msra.mxu0 %v13
    %23 = vmatprep.subr.mxu0 0.0
    %24 = vmatpush1.msra.mxu0 %v14
    %25 = vmatprep.subr.mxu0 0.0
    %26 = vmatpush1.msra.mxu0 %v15
    %27 = vmatprep.subr.mxu0 0.0
    %28 = vmatpush1.msra.mxu0 %v16
    %29 = vmatprep.subr.mxu0 0.0
    %30 = vmatpush1.msra.mxu0 0.0
    %31 = vmatprep.subr.mxu0 0.0
    %32 = vmatpush1.msra.mxu0 0.0
    %33 = vmatprep.subr.mxu0 0.0
    %34 = vmatpush1.msra.mxu0 0.0
    %35 = vmatprep.subr.mxu0 0.0
    %36 = vmatpush1.msra.mxu0 0.0
    %37 = vmatprep.subr.mxu0 0.0
    %38 = vmatpush1.msra.mxu0 0.0
    %39 = vmatprep.subr.mxu0 0.0
    %40 = vmatpush1.msra.mxu0 0.0
    %41 = vmatprep.subr.mxu0 0.0
    %42 = vmatpush1.msra.mxu0 0.0
    %43 = vmatprep.subr.mxu0 0.0
    %44 = vmatpush1.msra.mxu0 0.0
    %45 = vmatprep.subr.mxu0 0.0
    %46 = vmatpush1.msra.mxu0 0.0
    %47 = vmatprep.subr.mxu0 0.0
    %48 = vmatpush1.msra.mxu0 0.0
    %49 = vmatprep.subr.mxu0 0.0
    %50 = vmatpush1.msra.mxu0 0.0
    %51 = vmatprep.subr.mxu0 0.0
    %52 = vmatpush1.msra.mxu0 0.0
    %53 = vmatprep.subr.mxu0 0.0
    %54 = vmatpush1.msra.mxu0 0.0
    %55 = vmatprep.subr.mxu0 0.0
    %56 = vmatpush1.msra.mxu0 0.0
    %57 = vmatprep.subr.mxu0 0.0
    %58 = vmatpush1.msra.mxu0 0.0
    %59 = vmatprep.subr.mxu0 0.0
    %60 = vmatpush1.msra.mxu0 0.0
    %61 = vmatprep.subr.mxu0 0.0
    %62 = vmatpush1.msra.mxu0 0.0
    %63 = vmatprep.subr.mxu0 0.0
    %64 = vmatpush1.msra.mxu0 0.0
    %65 = vmatprep.subr.mxu0 0.0
    %66 = vmatpush1.msra.mxu0 0.0
    %67 = vmatprep.subr.mxu0 0.0
    %68 = vmatpush1.msra.mxu0 0.0
    %69 = vmatprep.subr.mxu0 0.0
    %70 = vmatpush1.msra.mxu0 0.0
    %71 = vmatprep.subr.mxu0 0.0
    %72 = vmatpush1.msra.mxu0 0.0
    %73 = vmatprep.subr.mxu0 0.0
    %74 = vmatpush1.msra.mxu0 0.0
    %75 = vmatprep.subr.mxu0 0.0
    %76 = vmatpush1.msra.mxu0 0.0
    %77 = vmatprep.subr.mxu0 0.0
    %78 = vmatpush1.msra.mxu0 0.0
    %79 = vmatprep.subr.mxu0 0.0
    %80 = vmatpush1.msra.mxu0 0.0
    %81 = vmatprep.subr.mxu0 0.0
    %82 = vmatpush1.msra.mxu0 0.0
    %83 = vmatprep.subr.mxu0 0.0
    %84 = vmatpush1.msra.mxu0 0.0
    %85 = vmatprep.mubr.f32.mxu0 0.0
    %86 = vmatmul.mubr.f32.gmra.mrb[0].mxu0 %v19
    %v87 = vpop.f32.mrb[0].mxu0
    %v88 = vadd.f32 0.0, %v87
    %v89 = vpop.f32.mrb[0].mxu0
    %90 = vdwg.mxu0
    %s91 = scalar_lea.vmem %s1, 32
    %v92 = vld [vmem:[%s91] sm:$0xff]
    %v93 = vld [vmem:[%s91 + $0x8] sm:$0xff]
    %v94 = vld [vmem:[%s91 + $0x10] sm:$0xff]
    %v95 = vld [vmem:[%s91 + $0x18] sm:$0xff]
    %96 = vrot.lane.b32.xlu0 %v12, 96
    %v97 = vpop.permute.xlu0 %96
    %v98 = vsel %vm17, %v97, 0
    %100 = vmatprep.subr.mxu0 0.0
    %101 = vmatpush1.msra.mxu0 %v92
    %102 = vmatprep.subr.mxu0 0.0
    %103 = vmatpush1.msra.mxu0 %v93
    %104 = vmatprep.subr.mxu0 0.0
    %105 = vmatpush1.msra.mxu0 %v94
    %106 = vmatprep.subr.mxu0 0.0
    %107 = vmatpush1.msra.mxu0 %v95
    %108 = vmatprep.subr.mxu0 0.0
    %109 = vmatpush1.msra.mxu0 0.0
    %110 = vmatprep.subr.mxu0 0.0
    %111 = vmatpush1.msra.mxu0 0.0
    %112 = vmatprep.subr.mxu0 0.0
    %113 = vmatpush1.msra.mxu0 0.0
    %114 = vmatprep.subr.mxu0 0.0
    %115 = vmatpush1.msra.mxu0 0.0
    %116 = vmatprep.subr.mxu0 0.0
    %117 = vmatpush1.msra.mxu0 0.0
    %118 = vmatprep.subr.mxu0 0.0
    %119 = vmatpush1.msra.mxu0 0.0
    %120 = vmatprep.subr.mxu0 0.0
    %121 = vmatpush1.msra.mxu0 0.0
    %122 = vmatprep.subr.mxu0 0.0
    %123 = vmatpush1.msra.mxu0 0.0
    %124 = vmatprep.subr.mxu0 0.0
    %125 = vmatpush1.msra.mxu0 0.0
    %126 = vmatprep.subr.mxu0 0.0
    %127 = vmatpush1.msra.mxu0 0.0
    %128 = vmatprep.subr.mxu0 0.0
    %129 = vmatpush1.msra.mxu0 0.0
    %130 = vmatprep.subr.mxu0 0.0
    %131 = vmatpush1.msra.mxu0 0.0
    %132 = vmatprep.subr.mxu0 0.0
    %133 = vmatpush1.msra.mxu0 0.0
    %134 = vmatprep.subr.mxu0 0.0
    %135 = vmatpush1.msra.mxu0 0.0
    %136 = vmatprep.subr.mxu0 0.0
    %137 = vmatpush1.msra.mxu0 0.0
    %138 = vmatprep.subr.mxu0 0.0
    %139 = vmatpush1.msra.mxu0 0.0
    %140 = vmatprep.subr.mxu0 0.0
    %141 = vmatpush1.msra.mxu0 0.0
    %142 = vmatprep.subr.mxu0 0.0
    %143 = vmatpush1.msra.mxu0 0.0
    %144 = vmatprep.subr.mxu0 0.0
    %145 = vmatpush1.msra.mxu0 0.0
    %146 = vmatprep.subr.mxu0 0.0
    %147 = vmatpush1.msra.mxu0 0.0
    %148 = vmatprep.subr.mxu0 0.0
    %149 = vmatpush1.msra.mxu0 0.0
    %150 = vmatprep.subr.mxu0 0.0
    %151 = vmatpush1.msra.mxu0 0.0
    %152 = vmatprep.subr.mxu0 0.0
    %153 = vmatpush1.msra.mxu0 0.0
    %154 = vmatprep.subr.mxu0 0.0
    %155 = vmatpush1.msra.mxu0 0.0
    %156 = vmatprep.subr.mxu0 0.0
    %157 = vmatpush1.msra.mxu0 0.0
    %158 = vmatprep.subr.mxu0 0.0
    %159 = vmatpush1.msra.mxu0 0.0
    %160 = vmatprep.subr.mxu0 0.0
    %161 = vmatpush1.msra.mxu0 0.0
    %162 = vmatprep.subr.mxu0 0.0
    %163 = vmatpush1.msra.mxu0 0.0
    %164 = vmatprep.mubr.f32.mxu0 0.0
    %165 = vmatmul.mubr.f32.gmra.mrb[0].mxu0 %v98
    %v166 = vpop.f32.mrb[0].mxu0
    %v167 = vadd.f32 0.0, %v166
    %v168 = vpop.f32.mrb[0].mxu0
    %169 = vdwg.mxu0
    %s170 = scalar_lea.vmem %s1, 64
    %v171 = vld [vmem:[%s170] sm:$0xff]
    %v172 = vld [vmem:[%s170 + $0x8] sm:$0xff]
    %v173 = vld [vmem:[%s170 + $0x10] sm:$0xff]
    %v174 = vld [vmem:[%s170 + $0x18] sm:$0xff]
    %175 = vrot.lane.b32.xlu0 %v12, 64
    %v176 = vpop.permute.xlu0 %175
    %v177 = vsel %vm17, %v176, 0
    %179 = vmatprep.subr.mxu0 0.0
    %180 = vmatpush1.msra.mxu0 %v171
    %181 = vmatprep.subr.mxu0 0.0
    %182 = vmatpush1.msra.mxu0 %v172
    %183 = vmatprep.subr.mxu0 0.0
    %184 = vmatpush1.msra.mxu0 %v173
    %185 = vmatprep.subr.mxu0 0.0
    %186 = vmatpush1.msra.mxu0 %v174
    %187 = vmatprep.subr.mxu0 0.0
    %188 = vmatpush1.msra.mxu0 0.0
    %189 = vmatprep.subr.mxu0 0.0
    %190 = vmatpush1.msra.mxu0 0.0
    %191 = vmatprep.subr.mxu0 0.0
    %192 = vmatpush1.msra.mxu0 0.0
    %193 = vmatprep.subr.mxu0 0.0
    %194 = vmatpush1.msra.mxu0 0.0
    %195 = vmatprep.subr.mxu0 0.0
    %196 = vmatpush1.msra.mxu0 0.0
    %197 = vmatprep.subr.mxu0 0.0
    %198 = vmatpush1.msra.mxu0 0.0
    %199 = vmatprep.subr.mxu0 0.0
    %200 = vmatpush1.msra.mxu0 0.0
    %201 = vmatprep.subr.mxu0 0.0
    %202 = vmatpush1.msra.mxu0 0.0
    %203 = vmatprep.subr.mxu0 0.0
    %204 = vmatpush1.msra.mxu0 0.0
    %205 = vmatprep.subr.mxu0 0.0
    %206 = vmatpush1.msra.mxu0 0.0
    %207 = vmatprep.subr.mxu0 0.0
    %208 = vmatpush1.msra.mxu0 0.0
    %209 = vmatprep.subr.mxu0 0.0
    %210 = vmatpush1.msra.mxu0 0.0
    %211 = vmatprep.subr.mxu0 0.0
    %212 = vmatpush1.msra.mxu0 0.0
    %213 = vmatprep.subr.mxu0 0.0
    %214 = vmatpush1.msra.mxu0 0.0
    %215 = vmatprep.subr.mxu0 0.0
    %216 = vmatpush1.msra.mxu0 0.0
    %217 = vmatprep.subr.mxu0 0.0
    %218 = vmatpush1.msra.mxu0 0.0
    %219 = vmatprep.subr.mxu0 0.0
    %220 = vmatpush1.msra.mxu0 0.0
    %221 = vmatprep.subr.mxu0 0.0
    %222 = vmatpush1.msra.mxu0 0.0
    %223 = vmatprep.subr.mxu0 0.0
    %224 = vmatpush1.msra.mxu0 0.0
    %225 = vmatprep.subr.mxu0 0.0
    %226 = vmatpush1.msra.mxu0 0.0
    %227 = vmatprep.subr.mxu0 0.0
    %228 = vmatpush1.msra.mxu0 0.0
    %229 = vmatprep.subr.mxu0 0.0
    %230 = vmatpush1.msra.mxu0 0.0
    %231 = vmatprep.subr.mxu0 0.0
    %232 = vmatpush1.msra.mxu0 0.0
    %233 = vmatprep.subr.mxu0 0.0
    %234 = vmatpush1.msra.mxu0 0.0
    %235 = vmatprep.subr.mxu0 0.0
    %236 = vmatpush1.msra.mxu0 0.0
    %237 = vmatprep.subr.mxu0 0.0
    %238 = vmatpush1.msra.mxu0 0.0
    %239 = vmatprep.subr.mxu0 0.0
    %240 = vmatpush1.msra.mxu0 0.0
    %241 = vmatprep.subr.mxu0 0.0
    %242 = vmatpush1.msra.mxu0 0.0
    %243 = vmatprep.mubr.f32.mxu0 0.0
    %244 = vmatmul.mubr.f32.gmra.mrb[0].mxu0 %v177
    %v245 = vpop.f32.mrb[0].mxu0
    %v246 = vadd.f32 0.0, %v245
    %v247 = vpop.f32.mrb[0].mxu0
    %248 = vdwg.mxu0
    %s249 = scalar_lea.vmem %s1, 96
    %v250 = vld [vmem:[%s249] sm:$0xff]
    %v251 = vld [vmem:[%s249 + $0x8] sm:$0xff]
    %v252 = vld [vmem:[%s249 + $0x10] sm:$0xff]
    %v253 = vld [vmem:[%s249 + $0x18] sm:$0xff]
    %254 = vrot.lane.b32.xlu0 %v12, 32
    %v255 = vpop.permute.xlu0 %254
    %v256 = vsel %vm17, %v255, 0
    %258 = vmatprep.subr.mxu0 0.0
    %259 = vmatpush1.msra.mxu0 %v250
    %260 = vmatprep.subr.mxu0 0.0
    %261 = vmatpush1.msra.mxu0 %v251
    %262 = vmatprep.subr.mxu0 0.0
    %263 = vmatpush1.msra.mxu0 %v252
    %264 = vmatprep.subr.mxu0 0.0
    %265 = vmatpush1.msra.mxu0 %v253
    %266 = vmatprep.subr.mxu0 0.0
    %267 = vmatpush1.msra.mxu0 0.0
    %268 = vmatprep.subr.mxu0 0.0
    %269 = vmatpush1.msra.mxu0 0.0
    %270 = vmatprep.subr.mxu0 0.0
    %271 = vmatpush1.msra.mxu0 0.0
    %272 = vmatprep.subr.mxu0 0.0
    %273 = vmatpush1.msra.mxu0 0.0
    %274 = vmatprep.subr.mxu0 0.0
    %275 = vmatpush1.msra.mxu0 0.0
    %276 = vmatprep.subr.mxu0 0.0
    %277 = vmatpush1.msra.mxu0 0.0
    %278 = vmatprep.subr.mxu0 0.0
    %279 = vmatpush1.msra.mxu0 0.0
    %280 = vmatprep.subr.mxu0 0.0
    %281 = vmatpush1.msra.mxu0 0.0
    %282 = vmatprep.subr.mxu0 0.0
    %283 = vmatpush1.msra.mxu0 0.0
    %284 = vmatprep.subr.mxu0 0.0
    %285 = vmatpush1.msra.mxu0 0.0
    %286 = vmatprep.subr.mxu0 0.0
    %287 = vmatpush1.msra.mxu0 0.0
    %288 = vmatprep.subr.mxu0 0.0
    %289 = vmatpush1.msra.mxu0 0.0
    %290 = vmatprep.subr.mxu0 0.0
    %291 = vmatpush1.msra.mxu0 0.0
    %292 = vmatprep.subr.mxu0 0.0
    %293 = vmatpush1.msra.mxu0 0.0
    %294 = vmatprep.subr.mxu0 0.0
    %295 = vmatpush1.msra.mxu0 0.0
    %296 = vmatprep.subr.mxu0 0.0
    %297 = vmatpush1.msra.mxu0 0.0
    %298 = vmatprep.subr.mxu0 0.0
    %299 = vmatpush1.msra.mxu0 0.0
    %300 = vmatprep.subr.mxu0 0.0
    %301 = vmatpush1.msra.mxu0 0.0
    %302 = vmatprep.subr.mxu0 0.0
    %303 = vmatpush1.msra.mxu0 0.0
    %304 = vmatprep.subr.mxu0 0.0
    %305 = vmatpush1.msra.mxu0 0.0
    %306 = vmatprep.subr.mxu0 0.0
    %307 = vmatpush1.msra.mxu0 0.0
    %308 = vmatprep.subr.mxu0 0.0
    %309 = vmatpush1.msra.mxu0 0.0
    %310 = vmatprep.subr.mxu0 0.0
    %311 = vmatpush1.msra.mxu0 0.0
    %312 = vmatprep.subr.mxu0 0.0
    %313 = vmatpush1.msra.mxu0 0.0
    %314 = vmatprep.subr.mxu0 0.0
    %315 = vmatpush1.msra.mxu0 0.0
    %316 = vmatprep.subr.mxu0 0.0
    %317 = vmatpush1.msra.mxu0 0.0
    %318 = vmatprep.subr.mxu0 0.0
    %319 = vmatpush1.msra.mxu0 0.0
    %320 = vmatprep.subr.mxu0 0.0
    %321 = vmatpush1.msra.mxu0 0.0
    %322 = vmatprep.mubr.f32.mxu0 0.0
    %323 = vmatmul.mubr.f32.gmra.mrb[0].mxu0 %v256
    %v324 = vpop.f32.mrb[0].mxu0
    %v325 = vadd.f32 0.0, %v324
    %v326 = vpop.f32.mrb[0].mxu0
    %327 = vdwg.mxu0
    %329 = vrot.lane.b32.xlu0 %v167, 16
    %v330 = vpop.permute.xlu0 %329
    %333 = vrot.lane.b32.xlu0 %v246, 32
    %v334 = vpop.permute.xlu0 %333
    %337 = vrot.lane.b32.xlu0 %v325, 48
    %v338 = vpop.permute.xlu0 %337
    %vm340 = vcmask 130048
    %v341 = vsel %vm340, %v88, %v330
    %v342 = vsel %vm17, %v341, %v334
    %vm343 = vcmask 392192
    %v344 = vsel %vm343, %v342, %v338
    %vm345 = vcmask 523264
    %346 = vst.msk [vmem:[#allocation2] sm:$0xff] %vm345, %v344
    // Predicated region
    $region10: #{tpu_custom_call.1} parent=1 // pred_check
      _
    $region11: #{tpu_custom_call.1} parent=1 // pred_check_branch
      %348 = sbr.rel (0) target = $region13
    $region12: #{tpu_custom_call.1} parent=1 // pred_region
      %s350 = ssub.s32 128, 128
      %351 = vsyncadd [#allocation3], %s350
      %s353 = sshll.u32 [#allocation2], 4
      %s354 = int_to_ptr.vmem [resolvable:$true] %s353
      %356 = dma.vmem_to_hbm [thread:$0]  %s354, 128, %s2, [#allocation3]
    $region13: #{tpu_custom_call.1} parent=1 // pred_fallthru
      _
    // Predicated region
    $region14: #{tpu_custom_call.1} parent=1 // pred_check
      _
    $region15: #{tpu_custom_call.1} parent=1 // pred_check_branch
      %358 = sbr.rel (0) target = $region17
    $region16: #{tpu_custom_call.1} parent=1 // pred_region
      %359 = dma.done [#allocation3], 128
    $region17: #{tpu_custom_call.1} parent=1 // pred_fallthru
      _
    %360 = vsyncpa [#allocation3], 1

</llo_original>
